<compile_context>
chip_gen: v5e
topology: v5e:2x2
jax: 0.10.0
libtpu: 0.0.40
codegen_flags: <defaults>
</compile_context>

<pallas_src>
import jax
import jax.numpy as jnp
from jax import lax
from jax.experimental import pallas as pl
from jax.experimental.pallas import tpu as pltpu


_LANE = 128        # lane width (last-dim tiling)
_SUBLANE = 8       # f32 sublane tiling (second-to-last dim)

# Conservative cap so the whole-table-in-VMEM variant fits every generation's
# scoped VMEM (v7x: 64 MiB physical / 32 MiB default scoped; v5e default
# scoped is only 16 MiB, so we raise vmem_limit_bytes explicitly below).
_VMEM_TABLE_BUDGET_BYTES = 24 * 1024 * 1024
_VMEM_LIMIT_BYTES = 32 * 1024 * 1024
_OUT_TILE_BUDGET_BYTES = 2 * 1024 * 1024   # per output buffer (double-buffered)
_XLA_SMALL_BATCH = 8                       # below this, plain XLA gather wins


def _round_up(x, m):
    return ((x + m - 1) // m) * m


# --------------------------------------------------------------------------
# Path 1: whole table resident in VMEM, batched in-kernel gather.
# --------------------------------------------------------------------------
def _gather_table_vmem_kernel(idx_ref, table_ref, out_ref):
    # idx_ref:   SMEM (B_padded,) int32 scalar-prefetched class indices.
    # table_ref: VMEM (n_classes, D_pad) whole table; its block index is
    #            constant across the grid so it is DMA'd from HBM only once.
    # out_ref:   VMEM (TB, D_pad) dense output tile.
    b = pl.program_id(0)
    tb = out_ref.shape[0]

    def body(i, carry):
        row = idx_ref[b * tb + i]
        out_ref[pl.ds(i, 1), :] = table_ref[pl.ds(row, 1), :]
        return carry

    lax.fori_loop(0, tb, body, 0)


def _lookup_table_in_vmem(ids, table, B):
    n_classes, d = table.shape
    itemsize = table.dtype.itemsize

    # Batch tile: sublane-dense (multiple of 8) and large enough to amortize
    # the ~0.35 us per-grid-step overhead, but bounded so double-buffered
    # output tiles stay well inside the VMEM limit.
    tb_cap = max(_SUBLANE,
                 (_OUT_TILE_BUDGET_BYTES // (d * itemsize)) // _SUBLANE * _SUBLANE)
    tb = min(256, tb_cap, _round_up(B, _SUBLANE))
    b_pad = _round_up(B, tb)
    if b_pad != B:
        ids = jnp.pad(ids, (0, b_pad - B))   # padded rows are sliced off later

    out = pl.pallas_call(
        _gather_table_vmem_kernel,
        out_shape=jax.ShapeDtypeStruct((b_pad, d), table.dtype),
        grid_spec=pltpu.PrefetchScalarGridSpec(
            num_scalar_prefetch=1,                 # class ids land in SMEM
            grid=(b_pad // tb,),
            in_specs=[
                # Whole table as a single VMEM block (full-array block shape).
                pl.BlockSpec((n_classes, d), lambda b, idx_ref: (0, 0)),
            ],
            out_specs=pl.BlockSpec((tb, d), lambda b, idx_ref: (b, 0)),
        ),
        compiler_params=pltpu.CompilerParams(
            # Output tiles are disjoint per grid step -> parallel (2 TCs on v7x).
            dimension_semantics=("parallel",),
            vmem_limit_bytes=_VMEM_LIMIT_BYTES,
        ),
    )(ids, table)
    return out


# --------------------------------------------------------------------------
# Path 2 (fallback): data-dependent BlockSpec row gather for huge tables.
# --------------------------------------------------------------------------
def _gather_row_dma_kernel(idx_ref, emb_row_ref, out_ref):
    del idx_ref   # used only inside the index_maps
    out_ref[...] = emb_row_ref[...]


def _lookup_row_dma(ids, table, B):
    # TODO(synk): for very large tables a batched manual make_async_copy gather
    # (TB rows per grid step into a VMEM scratch) would amortize per-step
    # overhead further than this per-row BlockSpec gather.
    n_classes, d = table.shape
    out = pl.pallas_call(
        _gather_row_dma_kernel,
        out_shape=jax.ShapeDtypeStruct((B, d), table.dtype),
        grid_spec=pltpu.PrefetchScalarGridSpec(
            num_scalar_prefetch=1,
            grid=(B,),
            in_specs=[
                pl.BlockSpec((1, d), lambda b, idx_ref: (idx_ref[b], 0),
                             pipeline_mode=pl.Buffered(4)),
            ],
            out_specs=pl.BlockSpec((1, d), lambda b, idx_ref: (b, 0)),
        ),
        compiler_params=pltpu.CompilerParams(
            dimension_semantics=("parallel",),
            vmem_limit_bytes=_VMEM_LIMIT_BYTES,
        ),
    )(ids, table)
    return out


# --------------------------------------------------------------------------
# Wrapper
# --------------------------------------------------------------------------
def class_embedding_lookup(class_ids: jax.Array, emb_table: jax.Array) -> jax.Array:
    """Gather rows of emb_table according to class_ids.

    class_ids: (B,) integer
    emb_table: (n_classes, embed_dim) float
    returns:   (B, 1, embed_dim)   (matches ClassEmbedder.forward)
    """
    B = class_ids.shape[0]
    n_classes, embed_dim = emb_table.shape

    # Clamp out-of-range ids (PyTorch would raise; we avoid an unchecked OOB
    # read/DMA inside the kernel).
    ids = jnp.clip(class_ids.astype(jnp.int32), 0, n_classes - 1)

    # Tiny batches: pallas_call dispatch dwarfs ~1 KB of useful data movement.
    if B <= _XLA_SMALL_BATCH:
        return emb_table[ids][:, None, :]

    # Pad embed_dim to a lane-dense multiple of 128 (no-op when already dense).
    d_pad = _round_up(embed_dim, _LANE)
    table = emb_table
    if d_pad != embed_dim:
        table = jnp.pad(emb_table, ((0, 0), (0, d_pad - embed_dim)))

    table_bytes = n_classes * d_pad * table.dtype.itemsize
    if table_bytes <= _VMEM_TABLE_BUDGET_BYTES:
        out = _lookup_table_in_vmem(ids, table, B)
    else:
        out = _lookup_row_dma(ids, table, B)

    out = out[:B, :embed_dim]
    return out[:, None, :]          # batch[key][:, None] -> embedding -> (B, 1, E)


class ClassEmbedder:
    """JAX/Pallas port of the PyTorch ClassEmbedder."""

    def __init__(self, embed_dim, n_classes=1000, key='class', *, rng=None):
        self.key = key
        self.n_classes = n_classes
        self.embed_dim = embed_dim
        if rng is None:
            rng = jax.random.PRNGKey(0)
        # torch.nn.Embedding default init: N(0, 1)
        self.embedding_weight = jax.random.normal(
            rng, (n_classes, embed_dim), dtype=jnp.float32)

    def __call__(self, batch, key=None):
        if key is None:
            key = self.key
        c = batch[key]
        return class_embedding_lookup(c, self.embedding_weight)


if __name__ == "__main__":
    root_key = jax.random.PRNGKey(0)
    k_w, k_idx = jax.random.split(root_key)

    embed_dim = 128
    n_classes = 1000
    batch_size = 64   # large enough to exercise the batched Pallas gather path

    embedder = ClassEmbedder(embed_dim=embed_dim, n_classes=n_classes,
                             key='class', rng=k_w)

    class_ids = jax.random.randint(k_idx, (batch_size,), 0, n_classes,
                                   dtype=jnp.int32)
    batch = {'class': class_ids}

    out = embedder(batch)
    out = jax.block_until_ready(out)

    # Sanity check against plain-JAX reference gather.
    ref = embedder.embedding_weight[class_ids][:, None, :]
    assert out.shape == (batch_size, 1, embed_dim), out.shape
    assert jnp.allclose(out, ref), "Pallas embedding lookup mismatch"

    print("KERNEL_OK")
</pallas_src>

<mosaic_0001>
module attributes {stable_mosaic.version = 11 : i64} {
  func.func @_gather_table_vmem_kernel(%arg0: i32, %arg1: memref<64xi32, #tpu.memory_space<smem>>, %arg2: memref<1000x128xf32, #tpu.memory_space<vmem>>, %arg3: memref<64x128xf32, #tpu.memory_space<vmem>>) attributes {dimension_semantics = [#tpu.dimension_semantics<parallel>], iteration_bounds = array<i64: 1>, scalar_prefetch = 1 : i64, scratch_operands = 0 : i64, tpu.core_type = #tpu.core_type<tc>, window_params = [{pipeline_mode = #tpu.pipeline_mode<synchronous>, transform_indices = @transform_0, window_bounds = array<i64: 1000, 128>}, {transform_indices = @transform_1, window_bounds = array<i64: 64, 128>}]} {
    %c0_i32 = arith.constant 0 : i32
    %c64_i32 = arith.constant 64 : i32
    %0 = arith.addi %c0_i32, %c64_i32 : i32
    %c1_i32 = arith.constant 1 : i32
    scf.for %arg4 = %c0_i32 to %0 step %c1_i32  : i32 {
      %c64_i32_1 = arith.constant 64 : i32
      %1 = arith.muli %arg0, %c64_i32_1 : i32
      %2 = arith.addi %1, %arg4 : i32
      %3 = arith.index_cast %2 : i32 to index
      %4 = memref.load %arg1[%3] : memref<64xi32, #tpu.memory_space<smem>>
      %5 = arith.index_cast %4 : i32 to index
      %c0 = arith.constant 0 : index
      %6 = vector.load %arg2[%5, %c0] : memref<1000x128xf32, #tpu.memory_space<vmem>>, vector<1x128xf32>
      %7 = arith.index_cast %arg4 : i32 to index
      %c0_2 = arith.constant 0 : index
      %8 = vector.load %arg3[%7, %c0_2] : memref<64x128xf32, #tpu.memory_space<vmem>>, vector<1x128xf32>
      tpu.vector_store %arg3[%7, %c0_2], %6 {strides = array<i32>} : memref<64x128xf32, #tpu.memory_space<vmem>>, vector<1x128xf32>,
    }
    %c64_i32_0 = arith.constant 64 : i32
    return
  }
  func.func @transform_0(%arg0: i32, %arg1: memref<64xi32, #tpu.memory_space<smem>>) -> (i32, i32) {
    %c0_i32 = arith.constant 0 : i32
    %c0_i32_0 = arith.constant 0 : i32
    %c0_i32_1 = arith.constant 0 : i32
    return %c0_i32, %c0_i32_0 : i32, i32
  }
  func.func @transform_1(%arg0: i32, %arg1: memref<64xi32, #tpu.memory_space<smem>>) -> (i32, i32) {
    %c0_i32 = arith.constant 0 : i32
    %c0_i32_0 = arith.constant 0 : i32
    return %arg0, %c0_i32 : i32, i32
  }
}

</mosaic_0001>

<llo_original>
// kernel: tpu_custom_call.1
$region0: #{tpu_custom_call.1}
  #allocation0 [shape = 'u32[]', space=smem, size = 0x4, offset = 0x4, fixed_abs, tag = 'smem constant byte address 0x4 - core index']
  #allocation1 [shape = 'u32[72,128]{1,0:T(1,128)}', space=vmem, size = 0x9000, scoped, tag = 'internal scratch']
  #allocation2 [shape = 's32[1]{0}', space=sflag, size = 0x4, scoped, tag = 'scoped memory for tpu_custom_call.1']
  #allocation3 [shape = 'u8[512]{0}', space=smem, size = 0x200, scoped, tag = 'prefetched SMEM operand 0']
  %s0 = inlined_call_operand.hbm [shape: s32[64], index: 0, kind: input, shape index: {}]
  %s1 = inlined_call_operand.hbm [shape: f32[1000,128], index: 1, kind: input, shape index: {}]
  %s2 = inlined_call_operand.hbm [shape: f32[64,128], index: 2, kind: output, shape index: {}]
  %s3 = sld [smem:[#allocation0]]
  $region25: #{tpu_custom_call.1} parent=0
    _
  %s5 = ssub.s32 1, %s3
  %s6 = scalar_select 0, %s5, %s3
  %s8 = sshll.u32 %s0, 4
  %s9 = int_to_ptr.hbm [resolvable:$true] %s8
  %11 = dma.hbm_to_smem %s9, 16, [#allocation3], [#allocation2]
  %13 = dma.done [#allocation2], 16
  %14 = sfence
  $region1: #{tpu_custom_call.1} parent=0
    #allocation4 [shape = 'u8[512000]{0}', space=vmem, size = 0x7d000, scoped, tag = 'input window, operand 1, single buffered']
    #allocation5 [shape = 's32[1]{0}', space=sflag, size = 0x4, scoped, tag = 'scoped memory for tpu_custom_call.1']
    #allocation6 [shape = 's32[1]{0}', space=sflag, size = 0x4, scoped, tag = 'scoped memory for tpu_custom_call.1']
    #allocation7 [shape = 'u8[32768]{0}', space=vmem, size = 0x8000, scoped, tag = 'output window, operand 0, single buffered']
    %15 = vsyncpa [#allocation5], 0
    %16 = vsyncpa [#allocation6], 0
    // Predicated region
    $region2: #{tpu_custom_call.1} parent=1 // pred_check
      _
    $region3: #{tpu_custom_call.1} parent=1 // pred_check_branch
      %18 = sbr.rel (0) target = $region5
    $region4: #{tpu_custom_call.1} parent=1 // pred_region
      %20 = vsyncadd [#allocation5], 0
      %s21 = sshll.u32 %s1, 4
      %s22 = int_to_ptr.hbm [resolvable:$true] %s21
      %s23 = sshll.u32 [#allocation4], 4
      %s24 = int_to_ptr.vmem [resolvable:$true] %s23
      %29 = dma.hbm_to_vmem [thread:$0]  %s22, 16000, %s24, [#allocation5], 128, 128, 8
    $region5: #{tpu_custom_call.1} parent=1 // pred_fallthru
      _
    // Predicated region
    $region6: #{tpu_custom_call.1} parent=1 // pred_check
      _
    $region7: #{tpu_custom_call.1} parent=1 // pred_check_branch
      %31 = sbr.rel (0) target = $region9
    $region8: #{tpu_custom_call.1} parent=1 // pred_region
      %33 = dma.done [#allocation5], 16000
    $region9: #{tpu_custom_call.1} parent=1 // pred_fallthru
      _
    loop: start=0, step=1, limit=64
    $region10: #{tpu_custom_call.1} parent=1 // loop_pre_header
      _
    $region11: #{tpu_custom_call.1} parent=1 // loop_header
      %s35 = sphi 0, %s39
      %p36 = scmp.ge.s32.totalorder %s35, 64
    $region12: #{tpu_custom_call.1} parent=1 // loop_header_branch
      %38 = sbr.rel (%p36) target = $region16
    $region13: #{tpu_custom_call.1} parent=1 // loop_body
      %s40 = smul.u32 0, 64
      %s41 = sadd.s32 %s40, %s35
      %s42 = sld [smem:[#allocation3 + %s41]]
      %s43 = scalar_lea.vmem [#allocation4], %s42
      %v44 = vld [vmem:[%s43] sm:$0x1]
      %s45 = scalar_lea.vmem [#allocation7], %s35
      %46 = vst [vmem:[%s45] sm:$0x1] %v44
    $region14: #{tpu_custom_call.1} parent=1 // loop_footer
      %s39 = sadd.s32 1, %s35
    $region15: #{tpu_custom_call.1} parent=1 // loop_footer_branch
      %34 = sbr.rel target = $region11
    $region16: #{tpu_custom_call.1} parent=1 // loop_exit
      _
    // Predicated region
    $region17: #{tpu_custom_call.1} parent=1 // pred_check
      _
    $region18: #{tpu_custom_call.1} parent=1 // pred_check_branch
      %48 = sbr.rel (0) target = $region20
    $region19: #{tpu_custom_call.1} parent=1 // pred_region
      %50 = vsyncadd [#allocation6], 0
      %s51 = sshll.u32 [#allocation7], 4
      %s52 = int_to_ptr.vmem [resolvable:$true] %s51
      %s53 = sshll.u32 %s2, 4
      %s54 = int_to_ptr.hbm [resolvable:$true] %s53
      %59 = dma.vmem_to_hbm [thread:$0]  %s52, 1024, %s54, [#allocation6], 128, 128, 8
    $region20: #{tpu_custom_call.1} parent=1 // pred_fallthru
      _
    // Predicated region
    $region21: #{tpu_custom_call.1} parent=1 // pred_check
      _
    $region22: #{tpu_custom_call.1} parent=1 // pred_check_branch
      %61 = sbr.rel (0) target = $region24
    $region23: #{tpu_custom_call.1} parent=1 // pred_region
      %63 = dma.done [#allocation6], 1024
    $region24: #{tpu_custom_call.1} parent=1 // pred_fallthru
      _
    %64 = vsyncpa [#allocation5], 1
    %65 = vsyncpa [#allocation6], 1

</llo_original>
